<compile_context>
chip_gen: v5e
topology: v5e:2x2
jax: 0.10.0
libtpu: 0.0.40
codegen_flags: <defaults>
</compile_context>

<pallas_src>
import math
from functools import partial

import jax
import jax.numpy as jnp
from jax import lax
from jax.experimental import pallas as pl
from jax.experimental.pallas import tpu as pltpu


# ---------------------------------------------------------------------------
# Kernels
# ---------------------------------------------------------------------------

def _rowcond_kernel(x_ref, c_ref, w_ref, b_ref, o_ref, *, eps, dim):
    """One cond row per action row.
    Blocks: x/o (tile_n, dim), c (tile_n, dim_cond), w (dim_cond, 2*dim), b (1, dim)."""
    x = x_ref[...].astype(jnp.float32)
    ms = jnp.mean(x * x, axis=-1, keepdims=True)
    normed = x * lax.rsqrt(ms + eps)

    # Single fused projection on the MXU (native dtype operands, f32 accumulate).
    proj = jnp.dot(c_ref[...], w_ref[...], preferred_element_type=jnp.float32)
    gamma = jax.nn.sigmoid(proj[:, :dim] + b_ref[...].astype(jnp.float32))
    beta = proj[:, dim:]

    o_ref[...] = (normed * gamma + beta).astype(o_ref.dtype)


def _groupcond_kernel(x_ref, c_ref, w_ref, b_ref, o_ref, *, eps, dim):
    """One cond row shared by a whole group of action rows.
    Blocks: x/o (1, tile_s, dim), c (1, 1, dim_cond), w (dim_cond, 2*dim), b (1, dim)."""
    x = x_ref[0].astype(jnp.float32)                       # (tile_s, dim)
    ms = jnp.mean(x * x, axis=-1, keepdims=True)
    normed = x * lax.rsqrt(ms + eps)

    proj = jnp.dot(c_ref[0], w_ref[...], preferred_element_type=jnp.float32)  # (1, 2*dim)
    gamma = jax.nn.sigmoid(proj[:, :dim] + b_ref[...].astype(jnp.float32))    # (1, dim)
    beta = proj[:, dim:]

    o_ref[0] = (normed * gamma + beta).astype(o_ref.dtype)


# ---------------------------------------------------------------------------
# VMEM budgeting (chip-aware)
# ---------------------------------------------------------------------------

def _vmem_budget_bytes():
    try:
        cap = int(pltpu.get_tpu_info().vmem_capacity_bytes)
    except Exception:
        cap = 64 * 1024 * 1024  # conservative fallback (v7x per-core physical VMEM)
    # Leave headroom for compiler-internal scratch; never ask for more than 100 MiB.
    return min(cap * 3 // 4, 100 * 1024 * 1024)


def _pick_tile_rows(n_rows, per_row_bytes, fixed_bytes, vmem_budget, max_rows):
    """Largest multiple-of-8 row tile that fits the budget and the problem."""
    avail = max(vmem_budget - fixed_bytes, 8 * per_row_bytes)
    tile = min(int(avail // per_row_bytes), int(max_rows))
    tile = min(tile, -(-n_rows // 8) * 8)          # no bigger than the (rounded-up) problem
    return max(8, (tile // 8) * 8)


# ---------------------------------------------------------------------------
# Weight preparation (hoisted out of the forward path)
# ---------------------------------------------------------------------------

def prepare_adaptive_rmsnorm_params(gamma_weight, gamma_bias, beta_weight):
    """Call once at weight-load time (not per forward).

    gamma_weight / beta_weight: (dim, dim_cond) PyTorch nn.Linear layout.
    Returns (w_fused (dim_cond, 2*dim), bias (1, dim)) in their native dtype —
    gamma columns first, beta columns second.
    """
    dim, _ = gamma_weight.shape
    w_fused = jnp.concatenate([gamma_weight.T, beta_weight.T], axis=1)
    bias = gamma_bias.reshape(1, dim)
    return w_fused, bias


# ---------------------------------------------------------------------------
# Forward
# ---------------------------------------------------------------------------

def adaptive_rmsnorm(actions, cond, w_fused, gamma_bias, *, eps=None,
                     vmem_budget=None, max_tile_rows=2048):
    """Fused AdaptiveRMSNorm forward.

    actions:    (..., dim)
    cond:       (..., dim_cond); leading dims either match actions' leading dims
                or are a broadcastable prefix/size-1 suffix (e.g. (B, 1, dim_cond)).
    w_fused:    (dim_cond, 2*dim)  from prepare_adaptive_rmsnorm_params
    gamma_bias: (dim,) or (1, dim)
    Returns (..., dim), same dtype as actions.
    """
    dim_cond, two_dim = w_fused.shape
    dim = two_dim // 2
    assert actions.shape[-1] == dim, (actions.shape, dim)
    assert cond.shape[-1] == dim_cond, (cond.shape, dim_cond)
    bias = gamma_bias.reshape(1, dim)

    if eps is None:
        # nn.RMSNorm(eps=None) uses the runtime dtype's eps.
        eps = float(jnp.finfo(actions.dtype).eps
                    if jnp.issubdtype(actions.dtype, jnp.floating)
                    else jnp.finfo(jnp.float32).eps)
    if vmem_budget is None:
        vmem_budget = _vmem_budget_bytes()

    lead = tuple(actions.shape[:-1])
    cond_lead = tuple(cond.shape[:-1])

    xbytes = actions.dtype.itemsize
    cbytes = cond.dtype.itemsize
    obytes = xbytes
    # Resident weight/bias blocks, counted as double-buffered (conservative).
    fixed = 2 * (w_fused.size * w_fused.dtype.itemsize + bias.size * bias.dtype.itemsize)

    def _params(sem):
        return pltpu.CompilerParams(dimension_semantics=sem,
                                    vmem_limit_bytes=int(vmem_budget))

    # ---- fast path: one cond row per action row --------------------------
    if cond_lead == lead:
        x = actions.reshape(-1, dim)
        c = cond.reshape(-1, dim_cond)
        n = x.shape[0]

        per_row = 2 * dim * (xbytes + obytes) + 2 * dim_cond * cbytes
        tile_n = _pick_tile_rows(n, per_row, fixed, vmem_budget, max_tile_rows)

        out = pl.pallas_call(
            partial(_rowcond_kernel, eps=eps, dim=dim),
            out_shape=jax.ShapeDtypeStruct((n, dim), actions.dtype),
            grid_spec=pltpu.PrefetchScalarGridSpec(
                num_scalar_prefetch=0,
                grid=(pl.cdiv(n, tile_n),),
                in_specs=[
                    pl.BlockSpec((tile_n, dim), lambda i: (i, 0)),        # actions tile
                    pl.BlockSpec((tile_n, dim_cond), lambda i: (i, 0)),   # cond tile
                    pl.BlockSpec((dim_cond, 2 * dim), lambda i: (0, 0)),  # fused W (resident)
                    pl.BlockSpec((1, dim), lambda i: (0, 0)),             # gamma bias (resident)
                ],
                out_specs=pl.BlockSpec((tile_n, dim), lambda i: (i, 0)),
            ),
            compiler_params=_params(("parallel",)),
        )(x, c, w_fused, bias)
        return out.reshape(*lead, dim)

    # ---- grouped path: cond shared across trailing action axes -----------
    group_k = None
    if len(cond_lead) <= len(lead):
        padded = (1,) * (len(lead) - len(cond_lead)) + cond_lead
        k = len(lead)
        while k > 0 and padded[k - 1] == 1:
            k -= 1
        if padded[:k] == lead[:k]:
            group_k = k

    if group_k is not None:
        G = math.prod(lead[:group_k]) if group_k > 0 else 1
        S = math.prod(lead[group_k:]) if group_k < len(lead) else 1
        x = actions.reshape(G, S, dim)
        c = cond.reshape(G, 1, dim_cond)

        per_row = 2 * dim * (xbytes + obytes)
        fixed_g = fixed + 2 * dim_cond * cbytes
        tile_s = _pick_tile_rows(S, per_row, fixed_g, vmem_budget, max_tile_rows)

        out = pl.pallas_call(
            partial(_groupcond_kernel, eps=eps, dim=dim),
            out_shape=jax.ShapeDtypeStruct((G, S, dim), actions.dtype),
            grid_spec=pltpu.PrefetchScalarGridSpec(
                num_scalar_prefetch=0,
                grid=(G, pl.cdiv(S, tile_s)),
                in_specs=[
                    pl.BlockSpec((1, tile_s, dim), lambda g, i: (g, i, 0)),    # actions tile
                    pl.BlockSpec((1, 1, dim_cond), lambda g, i: (g, 0, 0)),    # shared cond row
                    pl.BlockSpec((dim_cond, 2 * dim), lambda g, i: (0, 0)),    # fused W (resident)
                    pl.BlockSpec((1, dim), lambda g, i: (0, 0)),               # gamma bias (resident)
                ],
                out_specs=pl.BlockSpec((1, tile_s, dim), lambda g, i: (g, i, 0)),
            ),
            compiler_params=_params(("parallel", "parallel")),
        )(x, c, w_fused, bias)
        return out.reshape(*lead, dim)

    # TODO(synk): cond broadcast along a *middle* leading axis is materialized
    # (extra HBM traffic); only matching / prefix-shared cond layouts avoid it.
    cond_b = jnp.broadcast_to(cond, lead + (dim_cond,))
    return adaptive_rmsnorm(actions, cond_b, w_fused, gamma_bias, eps=eps,
                            vmem_budget=vmem_budget, max_tile_rows=max_tile_rows)


# ---------------------------------------------------------------------------
# Demo / correctness check
# ---------------------------------------------------------------------------

if __name__ == "__main__":
    key = jax.random.PRNGKey(0)
    k_a, k_c, k_wg, k_bg, k_wb = jax.random.split(key, 5)

    batch, seq, dim, dim_cond = 2, 8, 128, 32

    actions = jax.random.normal(k_a, (batch, seq, dim), dtype=jnp.float32)
    cond_full = jax.random.normal(k_c, (batch, seq, dim_cond), dtype=jnp.float32)
    cond_shared = cond_full[:, :1, :]                      # (batch, 1, dim_cond)

    # nn.Linear default init: U(-1/sqrt(fan_in), 1/sqrt(fan_in)).
    bound = 1.0 / math.sqrt(dim_cond)
    gamma_weight = jax.random.uniform(k_wg, (dim, dim_cond), minval=-bound,
                                      maxval=bound, dtype=jnp.float32)
    gamma_bias = jax.random.uniform(k_bg, (dim,), minval=-bound, maxval=bound,
                                    dtype=jnp.float32)
    beta_weight = jax.random.uniform(k_wb, (dim, dim_cond), minval=-bound,
                                     maxval=bound, dtype=jnp.float32)

    # Hoisted weight prep — done once, not per forward call.
    w_fused, bias = prepare_adaptive_rmsnorm_params(gamma_weight, gamma_bias,
                                                    beta_weight)

    def reference(a, c):
        eps = float(jnp.finfo(a.dtype).eps)
        normed = a * lax.rsqrt(jnp.mean(a * a, axis=-1, keepdims=True) + eps)
        gamma = jax.nn.sigmoid(c @ gamma_weight.T + gamma_bias)
        beta = c @ beta_weight.T
        return normed * gamma + beta

    # Path 1: cond has the same leading shape as actions (fully fused per-row).
    out1 = jax.block_until_ready(adaptive_rmsnorm(actions, cond_full, w_fused, bias))
    ref1 = reference(actions, cond_full)
    assert out1.shape == (batch, seq, dim), out1.shape
    err1 = float(jnp.max(jnp.abs(out1 - ref1)))
    assert jnp.allclose(out1, ref1, atol=1e-5, rtol=1e-5), err1

    # Path 2: cond shared across the seq axis — no broadcast materialization.
    out2 = jax.block_until_ready(adaptive_rmsnorm(actions, cond_shared, w_fused, bias))
    ref2 = reference(actions, cond_shared)
    assert out2.shape == (batch, seq, dim), out2.shape
    err2 = float(jnp.max(jnp.abs(out2 - ref2)))
    assert jnp.allclose(out2, ref2, atol=1e-5, rtol=1e-5), err2

    print("KERNEL_OK")
</pallas_src>

<mosaic_0001>
module attributes {stable_mosaic.version = 11 : i64} {
  func.func @_rowcond_kernel(%arg0: i32, %arg1: memref<16x128xf32, #tpu.memory_space<vmem>>, %arg2: memref<16x32xf32, #tpu.memory_space<vmem>>, %arg3: memref<32x256xf32, #tpu.memory_space<vmem>>, %arg4: memref<1x128xf32, #tpu.memory_space<vmem>>, %arg5: memref<16x128xf32, #tpu.memory_space<vmem>>) attributes {dimension_semantics = [#tpu.dimension_semantics<parallel>], iteration_bounds = array<i64: 1>, scalar_prefetch = 0 : i64, scratch_operands = 0 : i64, tpu.core_type = #tpu.core_type<tc>, window_params = [{transform_indices = @transform_0, window_bounds = array<i64: 16, 128>}, {transform_indices = @transform_1, window_bounds = array<i64: 16, 32>}, {pipeline_mode = #tpu.pipeline_mode<synchronous>, transform_indices = @transform_2, window_bounds = array<i64: 32, 256>}, {pipeline_mode = #tpu.pipeline_mode<synchronous>, transform_indices = @transform_3, window_bounds = array<i64: 1, 128>}, {transform_indices = @transform_4, window_bounds = array<i64: 16, 128>}]} {
    %c0 = arith.constant 0 : index
    %c0_0 = arith.constant 0 : index
    %0 = vector.load %arg1[%c0, %c0_0] : memref<16x128xf32, #tpu.memory_space<vmem>>, vector<16x128xf32>
    %1 = arith.mulf %0, %0 : vector<16x128xf32>
    %cst = arith.constant dense<0.000000e+00> : vector<16xf32>
    %2 = vector.multi_reduction <add>, %1, %cst [1] : vector<16x128xf32> to vector<16xf32>
    %3 = vector.shape_cast %2 : vector<16xf32> to vector<16x1xf32>
    %cst_1 = arith.constant 1.280000e+02 : f32
    %4 = vector.broadcast %cst_1 : f32 to vector<16x1xf32>
    %5 = arith.divf %3, %4 : vector<16x1xf32>
    %cst_2 = arith.constant 1.1920929E-7 : f32
    %6 = vector.broadcast %cst_2 : f32 to vector<16x1xf32>
    %7 = arith.addf %5, %6 : vector<16x1xf32>
    %8 = math.rsqrt %7 : vector<16x1xf32>
    %9 = vector.broadcast %8 : vector<16x1xf32> to vector<16x128xf32>
    %10 = arith.mulf %0, %9 : vector<16x128xf32>
    %c0_3 = arith.constant 0 : index
    %c0_4 = arith.constant 0 : index
    %11 = vector.load %arg2[%c0_3, %c0_4] : memref<16x32xf32, #tpu.memory_space<vmem>>, vector<16x32xf32>
    %c0_5 = arith.constant 0 : index
    %c0_6 = arith.constant 0 : index
    %12 = vector.load %arg3[%c0_5, %c0_6] : memref<32x256xf32, #tpu.memory_space<vmem>>, vector<32x256xf32>
    %cst_7 = arith.constant dense<0.000000e+00> : vector<16x256xf32>
    %13 = tpu.matmul %11, %12, %cst_7 {dimension_numbers = #tpu.dot_dimension_numbers<[1], [0], [0], [1], [0, 0, 1, 1], [], []>} : vector<16x32xf32>, vector<32x256xf32>, vector<16x256xf32> -> vector<16x256xf32>
    %14 = vector.extract_strided_slice %13 {offsets = [0, 0], sizes = [16, 128], strides = [1, 1]} : vector<16x256xf32> to vector<16x128xf32>
    %c0_8 = arith.constant 0 : index
    %c0_9 = arith.constant 0 : index
    %15 = vector.load %arg4[%c0_8, %c0_9] : memref<1x128xf32, #tpu.memory_space<vmem>>, vector<1x128xf32>
    %16 = vector.broadcast %15 : vector<1x128xf32> to vector<16x128xf32>
    %17 = arith.addf %14, %16 : vector<16x128xf32>
    %18 = arith.negf %17 : vector<16x128xf32>
    %19 = math.exp %18 : vector<16x128xf32>
    %cst_10 = arith.constant 1.000000e+00 : f32
    %20 = vector.broadcast %cst_10 : f32 to vector<16x128xf32>
    %21 = arith.addf %20, %19 : vector<16x128xf32>
    %22 = arith.divf %20, %21 : vector<16x128xf32>
    %23 = vector.extract_strided_slice %13 {offsets = [0, 128], sizes = [16, 128], strides = [1, 1]} : vector<16x256xf32> to vector<16x128xf32>
    %24 = arith.mulf %10, %22 : vector<16x128xf32>
    %25 = arith.addf %24, %23 : vector<16x128xf32>
    %c0_11 = arith.constant 0 : index
    %c0_12 = arith.constant 0 : index
    %26 = vector.load %arg5[%c0_11, %c0_12] : memref<16x128xf32, #tpu.memory_space<vmem>>, vector<16x128xf32>
    tpu.vector_store %arg5[%c0_11, %c0_12], %25 {strides = array<i32>} : memref<16x128xf32, #tpu.memory_space<vmem>>, vector<16x128xf32>,
    return
  }
  func.func @transform_0(%arg0: i32) -> (i32, i32) {
    %c0_i32 = arith.constant 0 : i32
    %c0_i32_0 = arith.constant 0 : i32
    return %arg0, %c0_i32 : i32, i32
  }
  func.func @transform_1(%arg0: i32) -> (i32, i32) {
    %c0_i32 = arith.constant 0 : i32
    %c0_i32_0 = arith.constant 0 : i32
    return %arg0, %c0_i32 : i32, i32
  }
  func.func @transform_2(%arg0: i32) -> (i32, i32) {
    %c0_i32 = arith.constant 0 : i32
    %c0_i32_0 = arith.constant 0 : i32
    %c0_i32_1 = arith.constant 0 : i32
    return %c0_i32, %c0_i32_0 : i32, i32
  }
  func.func @transform_3(%arg0: i32) -> (i32, i32) {
    %c0_i32 = arith.constant 0 : i32
    %c0_i32_0 = arith.constant 0 : i32
    %c0_i32_1 = arith.constant 0 : i32
    return %c0_i32, %c0_i32_0 : i32, i32
  }
  func.func @transform_4(%arg0: i32) -> (i32, i32) {
    %c0_i32 = arith.constant 0 : i32
    %c0_i32_0 = arith.constant 0 : i32
    return %arg0, %c0_i32 : i32, i32
  }
}

</mosaic_0001>

<llo_original>
// kernel: tpu_custom_call.1
$region0: #{tpu_custom_call.1}
  #allocation0 [shape = 'u32[]', space=smem, size = 0x4, offset = 0x4, fixed_abs, tag = 'smem constant byte address 0x4 - core index']
  #allocation1 [shape = 'u32[72,128]{1,0:T(1,128)}', space=vmem, size = 0x9000, scoped, tag = 'internal scratch']
  %s0 = inlined_call_operand.hbm [shape: f32[16,128], index: 0, kind: input, shape index: {}]
  %s1 = inlined_call_operand.hbm [shape: f32[16,32], index: 1, kind: input, shape index: {}]
  %s2 = inlined_call_operand.hbm [shape: f32[32,256], index: 2, kind: input, shape index: {}]
  %s3 = inlined_call_operand.vmem [shape: f32[1,128], index: 3, kind: input, shape index: {}]
  %s4 = inlined_call_operand.hbm [shape: f32[16,128], index: 4, kind: output, shape index: {}]
  %s5 = sld [smem:[#allocation0]]
  $region38: #{tpu_custom_call.1} parent=0
    _
  %s7 = ssub.s32 1, %s5
  %s8 = scalar_select 0, %s7, %s5
  $region1: #{tpu_custom_call.1} parent=0
    #allocation2 [shape = 'u8[8192]{0}', space=vmem, size = 0x2000, scoped, tag = 'input window, operand 0, single buffered']
    #allocation3 [shape = 's32[1]{0}', space=sflag, size = 0x4, scoped, tag = 'scoped memory for tpu_custom_call.1']
    #allocation4 [shape = 's32[1]{0}', space=sflag, size = 0x4, scoped, tag = 'scoped memory for tpu_custom_call.1']
    #allocation5 [shape = 'u8[8192]{0}', space=vmem, size = 0x2000, scoped, tag = 'input window, operand 1, single buffered']
    #allocation6 [shape = 's32[1]{0}', space=sflag, size = 0x4, scoped, tag = 'scoped memory for tpu_custom_call.1']
    #allocation7 [shape = 'u8[32768]{0}', space=vmem, size = 0x8000, scoped, tag = 'input window, operand 2, single buffered']
    #allocation8 [shape = 'u8[8192]{0}', space=vmem, size = 0x2000, scoped, tag = 'output window, operand 0, single buffered']
    %9 = vsyncpa [#allocation3], 0
    %10 = vsyncpa [#allocation6], 0
    %11 = vsyncpa [#allocation4], 0
    // Predicated region
    $region2: #{tpu_custom_call.1} parent=1 // pred_check
      _
    $region3: #{tpu_custom_call.1} parent=1 // pred_check_branch
      %13 = sbr.rel (0) target = $region5
    $region4: #{tpu_custom_call.1} parent=1 // pred_region
      %15 = vsyncadd [#allocation3], 0
      %s16 = sshll.u32 %s0, 4
      %s17 = int_to_ptr.hbm [resolvable:$true] %s16
      %s18 = sshll.u32 [#allocation2], 4
      %s19 = int_to_ptr.vmem [resolvable:$true] %s18
      %24 = dma.hbm_to_vmem [thread:$0]  %s17, 256, %s19, [#allocation3], 128, 128, 8
    $region5: #{tpu_custom_call.1} parent=1 // pred_fallthru
      _
    // Predicated region
    $region6: #{tpu_custom_call.1} parent=1 // pred_check
      _
    $region7: #{tpu_custom_call.1} parent=1 // pred_check_branch
      %26 = sbr.rel (0) target = $region9
    $region8: #{tpu_custom_call.1} parent=1 // pred_region
      %28 = vsyncadd [#allocation6], 0
      %s29 = sshll.u32 %s1, 4
      %s30 = int_to_ptr.hbm [resolvable:$true] %s29
      %s31 = sshll.u32 [#allocation5], 4
      %s32 = int_to_ptr.vmem [resolvable:$true] %s31
      %37 = dma.hbm_to_vmem [thread:$0]  %s30, 256, %s32, [#allocation6], 128, 128, 8
    $region9: #{tpu_custom_call.1} parent=1 // pred_fallthru
      _
    // Predicated region
    $region10: #{tpu_custom_call.1} parent=1 // pred_check
      _
    $region11: #{tpu_custom_call.1} parent=1 // pred_check_branch
      %39 = sbr.rel (0) target = $region13
    $region12: #{tpu_custom_call.1} parent=1 // pred_region
      %41 = vsyncadd [#allocation6], 0
      %s42 = sshll.u32 %s2, 4
      %s43 = int_to_ptr.hbm [resolvable:$true] %s42
      %s44 = sshll.u32 [#allocation7], 4
      %s45 = int_to_ptr.vmem [resolvable:$true] %s44
      %50 = dma.hbm_to_vmem [thread:$0]  %s43, 1024, %s45, [#allocation6], 256, 256, 16
    $region13: #{tpu_custom_call.1} parent=1 // pred_fallthru
      _
    // Predicated region
    $region14: #{tpu_custom_call.1} parent=1 // pred_check
      _
    $region15: #{tpu_custom_call.1} parent=1 // pred_check_branch
      %52 = sbr.rel (0) target = $region17
    $region16: #{tpu_custom_call.1} parent=1 // pred_region
      _
    $region17: #{tpu_custom_call.1} parent=1 // pred_fallthru
      _
    // Predicated region
    $region18: #{tpu_custom_call.1} parent=1 // pred_check
      _
    $region19: #{tpu_custom_call.1} parent=1 // pred_check_branch
      %54 = sbr.rel (0) target = $region21
    $region20: #{tpu_custom_call.1} parent=1 // pred_region
      %56 = dma.done [#allocation3], 256
    $region21: #{tpu_custom_call.1} parent=1 // pred_fallthru
      _
    // Predicated region
    $region22: #{tpu_custom_call.1} parent=1 // pred_check
      _
    $region23: #{tpu_custom_call.1} parent=1 // pred_check_branch
      %58 = sbr.rel (0) target = $region25
    $region24: #{tpu_custom_call.1} parent=1 // pred_region
      %60 = dma.done [#allocation6], 256
    $region25: #{tpu_custom_call.1} parent=1 // pred_fallthru
      _
    // Predicated region
    $region26: #{tpu_custom_call.1} parent=1 // pred_check
      _
    $region27: #{tpu_custom_call.1} parent=1 // pred_check_branch
      %62 = sbr.rel (0) target = $region29
    $region28: #{tpu_custom_call.1} parent=1 // pred_region
      %64 = dma.done [#allocation6], 1024
    $region29: #{tpu_custom_call.1} parent=1 // pred_fallthru
      _
    %v65 = vld [vmem:[#allocation2] sm:$0xff]
    %v66 = vld [vmem:[#allocation2 + $0x8] sm:$0xff]
    %v67 = vmul.f32 %v65, %v65
    %v68 = vmul.f32 %v66, %v66
    %69 = vadd.xlane.f32.xlu0 %v67
    %v70 = vpop.xlane.xlu0 %69
    %71 = vadd.xlane.f32.xlu0 %v68
    %v72 = vpop.xlane.xlu0 %71
    %v73 = vrcp.pop 128.0
    %v74 = vmul.f32 128.0, %v73
    %v75 = vsub.f32 1.0, %v74
    %v76 = vmul.f32 %v73, %v75
    %v77 = vadd.f32 %v73, %v76
    %vm78 = vweird.f32 %v73
    %v79 = vsel %vm78, %v73, %v77
    %v80 = vmul.f32 %v70, %v79
    %v81 = vmul.f32 %v72, %v79
    %v82 = vadd.f32 %v80, 1.1920929e-07
    %v83 = vadd.f32 %v81, 1.1920929e-07
    %v84 = vrsqrt.pop %v82
    %v85 = vmul.f32 %v84, %v82
    %v86 = vmul.f32 %v85, %v84
    %v87 = vmul.f32 0.5, %v86
    %v88 = vsub.f32 1.5, %v87
    %v89 = vmul.f32 %v84, %v88
    %vm90 = vweird.f32 %v82
    %vm91 = vweird.f32 %v84
    %vm92 = vmor %vm90, %vm91
    %v93 = vsel %vm92, %v84, %v89
    %v94 = vrsqrt.pop %v83
    %v95 = vmul.f32 %v94, %v83
    %v96 = vmul.f32 %v95, %v94
    %v97 = vmul.f32 0.5, %v96
    %v98 = vsub.f32 1.5, %v97
    %v99 = vmul.f32 %v94, %v98
    %vm100 = vweird.f32 %v83
    %vm101 = vweird.f32 %v94
    %vm102 = vmor %vm100, %vm101
    %v103 = vsel %vm102, %v94, %v99
    %v104 = vmul.f32 %v65, %v93
    %v105 = vmul.f32 %v66, %v103
    %v106 = vld [vmem:[#allocation5] sm:$0xff]
    %v107 = vld [vmem:[#allocation5 + $0x8] sm:$0xff]
    %v108 = vld [vmem:[#allocation7] sm:$0xff]
    %v109 = vld [vmem:[#allocation7 + $0x8] sm:$0xff]
    %v110 = vld [vmem:[#allocation7 + $0x10] sm:$0xff]
    %v111 = vld [vmem:[#allocation7 + $0x18] sm:$0xff]
    %v112 = vld [vmem:[#allocation7 + $0x20] sm:$0xff]
    %v113 = vld [vmem:[#allocation7 + $0x28] sm:$0xff]
    %v114 = vld [vmem:[#allocation7 + $0x30] sm:$0xff]
    %v115 = vld [vmem:[#allocation7 + $0x38] sm:$0xff]
    %vm116 = vcmask 261120
    %v118 = vsel %vm116, %v106, 0
    %v121 = vsel %vm116, %v107, 0
    %123 = vmatpush.msra.mxu0 0.0
    %124 = vmatpush.msra.mxu0 0.0
    %125 = vmatpush.msra.mxu0 0.0
    %126 = vmatpush.msra.mxu0 0.0
    %127 = vmatpush.msra.mxu0 0.0
    %128 = vmatpush.msra.mxu0 0.0
    %129 = vmatpush.msra.mxu0 0.0
    %130 = vmatpush.msra.mxu0 0.0
    %131 = vmatpush.msra.mxu0 0.0
    %132 = vmatpush.msra.mxu0 0.0
    %133 = vmatpush.msra.mxu0 0.0
    %134 = vmatpush.msra.mxu0 0.0
    %135 = vmatpush.msra.mxu0 %v114
    %136 = vmatpush.msra.mxu0 %v112
    %137 = vmatpush.msra.mxu0 %v110
    %138 = vmatpush.msra.mxu0 %v108
    %139 = vmatmul.f32.gmra.mxu0 %v118
    %v140 = vpop.f32.mrf.mxu0
    %v141 = vadd.f32 0.0, %v140
    %142 = vmatmul.f32.gmra.mxu0 %v121
    %v143 = vpop.f32.mrf.mxu0
    %v144 = vadd.f32 0.0, %v143
    %145 = vdwg.mxu0
    %146 = vmatpush.msra.mxu0 0.0
    %147 = vmatpush.msra.mxu0 0.0
    %148 = vmatpush.msra.mxu0 0.0
    %149 = vmatpush.msra.mxu0 0.0
    %150 = vmatpush.msra.mxu0 0.0
    %151 = vmatpush.msra.mxu0 0.0
    %152 = vmatpush.msra.mxu0 0.0
    %153 = vmatpush.msra.mxu0 0.0
    %154 = vmatpush.msra.mxu0 0.0
    %155 = vmatpush.msra.mxu0 0.0
    %156 = vmatpush.msra.mxu0 0.0
    %157 = vmatpush.msra.mxu0 0.0
    %158 = vmatpush.msra.mxu0 %v115
    %159 = vmatpush.msra.mxu0 %v113
    %160 = vmatpush.msra.mxu0 %v111
    %161 = vmatpush.msra.mxu0 %v109
    %162 = vmatmul.f32.gmra.mxu0 %v118
    %v163 = vpop.f32.mrf.mxu0
    %v164 = vadd.f32 0.0, %v163
    %165 = vmatmul.f32.gmra.mxu0 %v121
    %v166 = vpop.f32.mrf.mxu0
    %v167 = vadd.f32 0.0, %v166
    %168 = vdwg.mxu0
    %v169 = vld [vmem:[%s3] sm:$0x1]
    %v171 = vperm.slane %v169, 0
    %v173 = vadd.f32 %v141, %v171
    %v174 = vadd.f32 %v144, %v171
    %v175 = vxor.u32 %v173, 2147483648
    %v176 = vxor.u32 %v174, 2147483648
    %v177 = vmul.f32 %v175, 1.442695
    %v178 = vpow.pop %v177
    %v179 = vmul.f32 %v176, 1.442695
    %v180 = vpow.pop %v179
    %v181 = vadd.f32 %v178, 1.0
    %v182 = vadd.f32 %v180, 1.0
    %v183 = vrcp.pop %v181
    %v184 = vmul.f32 %v181, %v183
    %v185 = vsub.f32 1.0, %v184
    %v186 = vmul.f32 %v183, %v185
    %v187 = vadd.f32 %v183, %v186
    %vm188 = vweird.f32 %v181
    %vm189 = vweird.f32 %v183
    %vm190 = vmor %vm188, %vm189
    %v191 = vsel %vm190, %v183, %v187
    %v192 = vand.u32 2147483647, %v181
    %vm193 = vcmp.eq.f32.partialorder %v192, 8.507059e+37
    %v194 = vand.u32 %v181, 2147483648
    %v195 = vor.u32 1.1754944e-38, %v194
    %v196 = vsel %vm193, %v195, %v191
    %v197 = vmul.f32 1.0, %v196
    %v198 = vrcp.pop %v182
    %v199 = vmul.f32 %v182, %v198
    %v200 = vsub.f32 1.0, %v199
    %v201 = vmul.f32 %v198, %v200
    %v202 = vadd.f32 %v198, %v201
    %vm203 = vweird.f32 %v182
    %vm204 = vweird.f32 %v198
    %vm205 = vmor %vm203, %vm204
    %v206 = vsel %vm205, %v198, %v202
    %v207 = vand.u32 2147483647, %v182
    %vm208 = vcmp.eq.f32.partialorder %v207, 8.507059e+37
    %v209 = vand.u32 %v182, 2147483648
    %v210 = vor.u32 1.1754944e-38, %v209
    %v211 = vsel %vm208, %v210, %v206
    %v212 = vmul.f32 1.0, %v211
    %v213 = vmul.f32 %v104, %v197
    %v214 = vmul.f32 %v105, %v212
    %v215 = vadd.f32 %v213, %v164
    %v216 = vadd.f32 %v214, %v167
    %217 = vst [vmem:[#allocation8] sm:$0xff] %v215
    %218 = vst [vmem:[#allocation8 + $0x8] sm:$0xff] %v216
    // Predicated region
    $region30: #{tpu_custom_call.1} parent=1 // pred_check
      _
    $region31: #{tpu_custom_call.1} parent=1 // pred_check_branch
      %220 = sbr.rel (0) target = $region33
    $region32: #{tpu_custom_call.1} parent=1 // pred_region
      %222 = vsyncadd [#allocation4], 0
      %s223 = sshll.u32 [#allocation8], 4
      %s224 = int_to_ptr.vmem [resolvable:$true] %s223
      %s225 = sshll.u32 %s4, 4
      %s226 = int_to_ptr.hbm [resolvable:$true] %s225
      %231 = dma.vmem_to_hbm [thread:$0]  %s224, 256, %s226, [#allocation4], 128, 128, 8
    $region33: #{tpu_custom_call.1} parent=1 // pred_fallthru
      _
    // Predicated region
    $region34: #{tpu_custom_call.1} parent=1 // pred_check
      _
    $region35: #{tpu_custom_call.1} parent=1 // pred_check_branch
      %233 = sbr.rel (0) target = $region37
    $region36: #{tpu_custom_call.1} parent=1 // pred_region
      %235 = dma.done [#allocation4], 256
    $region37: #{tpu_custom_call.1} parent=1 // pred_fallthru
      _
    %236 = vsyncpa [#allocation3], 1
    %237 = vsyncpa [#allocation6], 1
    %238 = vsyncpa [#allocation4], 1

</llo_original>
